<compile_context>
chip_gen: v6e
topology: v6e:2x2x1
jax: 0.10.0
libtpu: 0.0.40
codegen_flags: <defaults>
</compile_context>

<pallas_src>
import math
import warnings

import jax
import jax.numpy as jnp
from jax.experimental import pallas as pl
from jax.experimental.pallas import tpu as pltpu

BN_EPS = 1e-5
LANE = 128
SUBLANE = 8


def _cdiv(a, b):
    return -(-a // b)


def _round_up(x, m):
    return _cdiv(x, m) * m


# ----------------------------------------------------------------------------
# Kernel: one batch tile through all four (BN-folded) linear layers.
# ----------------------------------------------------------------------------
def mlp_kernel(x_ref,
               w1_ref, b1_ref, w2_ref, b2_ref, w3_ref, b3_ref, w4_ref, b4_ref,
               o_ref):
    cdt = w1_ref.dtype  # bf16 compute dtype for the MXU
    # x may arrive as f32 (no wrapper pad/cast path) or bf16 (padded path);
    # casting here is a no-op for the latter.
    x = x_ref[...].astype(cdt)

    h = jnp.dot(x, w1_ref[...],
                preferred_element_type=jnp.float32) + b1_ref[...]
    h = jnp.maximum(h, 0.0).astype(cdt)
    # dropout1..3: identity in eval mode.
    # TODO(synk): training-mode dropout (pltpu.prng_random_bits mask) and
    # batch-statistics BatchNorm are not implemented; eval semantics only.

    h = jnp.dot(h, w2_ref[...],
                preferred_element_type=jnp.float32) + b2_ref[...]
    h = jnp.maximum(h, 0.0).astype(cdt)

    h = jnp.dot(h, w3_ref[...],
                preferred_element_type=jnp.float32) + b3_ref[...]
    h = jnp.maximum(h, 0.0).astype(cdt)

    out = jnp.dot(h, w4_ref[...],
                  preferred_element_type=jnp.float32) + b4_ref[...]
    o_ref[...] = out.astype(o_ref.dtype)


# ----------------------------------------------------------------------------
# Wrapper-time parameter preparation: BN folding + hidden-dim lane padding.
# ----------------------------------------------------------------------------
def _fold_bn(w, b, gamma, beta, mean, var):
    scale = gamma * jax.lax.rsqrt(var + BN_EPS)        # (1, out)
    return w * scale, (b - mean) * scale + beta


def _pad2(a, rows, cols, dtype):
    r, c = a.shape
    return jnp.pad(a, ((0, rows - r), (0, cols - c))).astype(dtype)


def fold_and_pad_params(params, *, use_batch_norm, compute_dtype):
    p = params
    if use_batch_norm:
        w1, b1 = _fold_bn(p["w1"], p["b1"], p["g1"], p["be1"], p["m1"], p["v1"])
        w2, b2 = _fold_bn(p["w2"], p["b2"], p["g2"], p["be2"], p["m2"], p["v2"])
        w3, b3 = _fold_bn(p["w3"], p["b3"], p["g3"], p["be3"], p["m3"], p["v3"])
    else:
        w1, b1 = p["w1"], p["b1"]
        w2, b2 = p["w2"], p["b2"]
        w3, b3 = p["w3"], p["b3"]
    w4, b4 = p["w4"], p["b4"]

    # Input / output dims are never padded: the kernel uses full-extent blocks
    # for those axes (avoids the x pad/cast round trip and the 128-lane
    # output over-write + wrapper slice).  Hidden dims are lane-padded so the
    # in-kernel activations stay lane-dense.
    dpi = w1.shape[0]                      # input dim (unpadded)
    hp = _round_up(w1.shape[1], LANE)      # padded hidden dim
    h2p = _round_up(w2.shape[1], LANE)     # padded 2*hidden dim
    dpo = w4.shape[1]                      # output dim (unpadded)

    flat = [
        _pad2(w1, dpi, hp, compute_dtype), _pad2(b1, 1, hp, jnp.float32),
        _pad2(w2, hp, h2p, compute_dtype), _pad2(b2, 1, h2p, jnp.float32),
        _pad2(w3, h2p, hp, compute_dtype), _pad2(b3, 1, hp, jnp.float32),
        _pad2(w4, hp, dpo, compute_dtype), _pad2(b4, 1, dpo, jnp.float32),
    ]
    return flat, (dpi, hp, h2p, dpo)


# ----------------------------------------------------------------------------
# Generation-aware VMEM budget / tile cap.
# ----------------------------------------------------------------------------
def _tpu_vmem_budget():
    """(per-TensorCore VMEM budget in bytes, batch-tile cap in rows)."""
    try:
        cap = int(getattr(pltpu.get_tpu_info(), "vmem_capacity_bytes", 64 << 20))
    except Exception:
        cap = 64 << 20  # conservative: assume v7x-sized VMEM
    if cap > (64 << 20):
        # v5e / v6e: 128 MiB physical VMEM; only the scoped default is small.
        return min(cap - (16 << 20), 100 << 20), 512
    # v7x: 64 MiB per TC (and both TCs hold full weight copies under
    # "parallel"); leave headroom for compiler-internal scratch.
    return min(cap, 64 << 20) - (8 << 20), 256


def _buffered_mode(n):
    """pl.Buffered(n) if this jax supports BlockSpec(pipeline_mode=...)."""
    try:
        mode = pl.Buffered(n)
        pl.BlockSpec((SUBLANE, LANE), lambda i: (0, 0), pipeline_mode=mode)
        return mode
    except TypeError:
        return None


# ----------------------------------------------------------------------------
# Forward wrapper.
# ----------------------------------------------------------------------------
def mlp_forward(x, params, *, use_batch_norm=True, batch_tile=None,
                compute_dtype=jnp.bfloat16, out_dtype=jnp.float32,
                x_buffers=2, core_parallel=False):
    B, D_in = x.shape

    flat, (dpi, hp, h2p, dpo) = fold_and_pad_params(
        params, use_batch_norm=use_batch_norm, compute_dtype=compute_dtype)
    assert dpi == D_in

    vmem_budget, tb_cap = _tpu_vmem_budget()

    # Grid-invariant weights/biases: request single-buffering (halves their
    # resident VMEM).  Optionally deepen the x pipeline when compute per tile
    # is too short to hide the x-tile DMA.
    w_mode = _buffered_mode(1)
    x_mode = _buffered_mode(x_buffers) if x_buffers > 2 else None
    param_mult = 1 if w_mode is not None else 2

    param_bytes = sum(a.size * a.dtype.itemsize for a in flat)
    out_itemsize = jnp.dtype(out_dtype).itemsize

    def vmem_est(tb, pm):
        x_tile = max(2, x_buffers) * tb * dpi * 4              # worst case f32 in
        o_tile = 2 * tb * dpo * out_itemsize
        acts = tb * (hp + h2p) * 4 + tb * max(hp, h2p) * 2     # f32 slab + bf16 copy
        return pm * param_bytes + x_tile + o_tile + acts + (4 << 20)

    # Batch tile: multiple of 8 sublanes, sized to minimize padding waste and
    # shrunk (never silently clamped) until the footprint fits this chip.
    if batch_tile is not None:
        tb = max(SUBLANE, _round_up(batch_tile, SUBLANE))
        if vmem_est(tb, param_mult) > vmem_budget:
            raise ValueError(
                f"batch_tile={batch_tile} exceeds the {vmem_budget >> 20} MiB "
                "per-TensorCore VMEM budget; reduce it or tile the weights.")
    else:
        steps = _cdiv(B, tb_cap)
        tb = min(_round_up(_cdiv(B, steps), SUBLANE), _round_up(B, SUBLANE))
        while vmem_est(tb, param_mult) > vmem_budget and tb > SUBLANE:
            tb = max(SUBLANE, _round_up(tb // 2, SUBLANE))
        if vmem_est(tb, param_mult) > vmem_budget:
            # Weights alone exceed one TensorCore's VMEM (large hidden_dim on
            # v7x).  Raise instead of silently clamping into a Mosaic failure.
            # TODO(synk): N-tile w2/w3 (pltpu.emit_pipeline over column tiles)
            # for hidden dims whose bf16 weights exceed per-TC VMEM.
            raise ValueError(
                f"folded weights ({param_bytes >> 20} MiB) exceed the "
                f"{vmem_budget >> 20} MiB per-TensorCore VMEM budget; a "
                "weight-tiled kernel variant is required.")

    bp = _round_up(B, tb)
    grid = (bp // tb,)

    # Input: skip the wrapper-side pad/cast HBM round trip whenever the batch
    # already divides the tile (the feature dim is never padded); the bf16
    # cast then happens in-kernel.  Otherwise pad rows directly in bf16.
    if bp == B:
        xp = x
    else:
        xp = jnp.pad(x, ((0, bp - B), (0, 0))).astype(compute_dtype)

    vmem_limit_single = int(min(vmem_budget, max(16 << 20, vmem_est(tb, 1))))
    vmem_limit_double = int(min(vmem_budget, max(16 << 20, vmem_est(tb, 2))))

    cost = pl.CostEstimate(
        flops=2 * bp * (dpi * hp + hp * h2p + h2p * hp + hp * dpo),
        transcendentals=0,
        bytes_accessed=int(xp.size * xp.dtype.itemsize + param_bytes
                           + bp * dpo * out_itemsize),
    )

    # "parallel" is safe everywhere; on v7x switch to CORE_PARALLEL if
    # profiling shows only one TensorCore busy on the batch axis.
    dim_sem = (pltpu.CORE_PARALLEL,) if core_parallel else ("parallel",)

    def build(weight_mode, input_mode, vmem_limit):
        def spec(shape, idx, mode):
            if mode is None:
                return pl.BlockSpec(shape, idx)
            return pl.BlockSpec(shape, idx, pipeline_mode=mode)

        in_specs = [spec((tb, dpi), lambda i: (i, 0), input_mode)]
        in_specs += [spec(a.shape, lambda i: (0, 0), weight_mode) for a in flat]
        out_specs = pl.BlockSpec((tb, dpo), lambda i: (i, 0))

        return pl.pallas_call(
            mlp_kernel,
            out_shape=jax.ShapeDtypeStruct((bp, dpo), out_dtype),
            grid_spec=pltpu.PrefetchScalarGridSpec(
                num_scalar_prefetch=0,
                grid=grid,
                in_specs=in_specs,
                out_specs=out_specs,
            ),
            compiler_params=pltpu.CompilerParams(
                dimension_semantics=dim_sem,
                vmem_limit_bytes=vmem_limit,
            ),
            cost_estimate=cost,
        )

    primary_limit = vmem_limit_single if w_mode is not None else vmem_limit_double
    try:
        out = build(w_mode, x_mode, primary_limit)(xp, *flat)
    except Exception as e:
        # Only pipeline_mode / Buffered-specific failures fall back (loudly);
        # VMEM-OOM and genuine lowering errors must surface.
        msg = str(e)
        pm_related = (w_mode is not None or x_mode is not None) and any(
            k in msg for k in ("pipeline_mode", "pipeline mode", "Buffered",
                               "buffer_count", "buffer count"))
        if not pm_related:
            raise
        warnings.warn(
            "pipeline_mode=pl.Buffered not supported by this lowering; "
            "falling back to default double-buffering: " + msg)
        out = build(None, None, vmem_limit_double)(xp, *flat)

    return out if bp == B else out[:B]


# ----------------------------------------------------------------------------
# Parameter init (PyTorch-style) and pure-JAX reference.
# ----------------------------------------------------------------------------
def init_params(key, input_dim, hidden_dim, output_dim):
    """Linear weights stored as (in, out).  BN gets non-trivial running stats
    so the BN-folding path is actually exercised."""
    def linear(key, fan_in, fan_out):
        kw, kb = jax.random.split(key)
        bound = 1.0 / math.sqrt(fan_in)
        w = jax.random.uniform(kw, (fan_in, fan_out), jnp.float32, -bound, bound)
        b = jax.random.uniform(kb, (1, fan_out), jnp.float32, -bound, bound)
        return w, b

    def bn(key, dim):
        kg, kb, km, kv = jax.random.split(key, 4)
        gamma = jax.random.uniform(kg, (1, dim), jnp.float32, 0.5, 1.5)
        beta = 0.1 * jax.random.normal(kb, (1, dim), jnp.float32)
        mean = 0.1 * jax.random.normal(km, (1, dim), jnp.float32)
        var = jax.random.uniform(kv, (1, dim), jnp.float32, 0.5, 1.5)
        return gamma, beta, mean, var

    k1, k2, k3, k4, k5, k6, k7 = jax.random.split(key, 7)
    w1, b1 = linear(k1, input_dim, hidden_dim)
    w2, b2 = linear(k2, hidden_dim, hidden_dim * 2)
    w3, b3 = linear(k3, hidden_dim * 2, hidden_dim)
    w4, b4 = linear(k4, hidden_dim, output_dim)
    g1, be1, m1, v1 = bn(k5, hidden_dim)
    g2, be2, m2, v2 = bn(k6, hidden_dim * 2)
    g3, be3, m3, v3 = bn(k7, hidden_dim)

    return dict(w1=w1, b1=b1, g1=g1, be1=be1, m1=m1, v1=v1,
                w2=w2, b2=b2, g2=g2, be2=be2, m2=m2, v2=v2,
                w3=w3, b3=b3, g3=g3, be3=be3, m3=m3, v3=v3,
                w4=w4, b4=b4)


def reference_forward(x, p, use_batch_norm=True):
    def bn(h, g, be, m, v):
        return g * (h - m) / jnp.sqrt(v + BN_EPS) + be

    h = x @ p["w1"] + p["b1"]
    if use_batch_norm:
        h = bn(h, p["g1"], p["be1"], p["m1"], p["v1"])
    h = jnp.maximum(h, 0.0)
    h = h @ p["w2"] + p["b2"]
    if use_batch_norm:
        h = bn(h, p["g2"], p["be2"], p["m2"], p["v2"])
    h = jnp.maximum(h, 0.0)
    h = h @ p["w3"] + p["b3"]
    if use_batch_norm:
        h = bn(h, p["g3"], p["be3"], p["m3"], p["v3"])
    h = jnp.maximum(h, 0.0)
    return h @ p["w4"] + p["b4"]


if __name__ == "__main__":
    input_dim, hidden_dim, output_dim = 32, 32, 16
    batch = 32

    key = jax.random.PRNGKey(0)
    kx, kp = jax.random.split(key)
    x = jax.random.normal(kx, (batch, input_dim), jnp.float32)
    params = init_params(kp, input_dim, hidden_dim, output_dim)

    # batch_tile=8 -> 4 grid steps; B % tb == 0 so the no-pad/no-cast fast
    # path (x passed through in f32, cast in-kernel) is exercised.
    out = mlp_forward(x, params, use_batch_norm=True, batch_tile=8)
    out = jax.block_until_ready(out)
    ref = reference_forward(x, params, use_batch_norm=True)
    assert out.shape == (batch, output_dim)
    assert jnp.allclose(out, ref, atol=5e-2, rtol=5e-2), (
        f"BN path mismatch: max abs err {jnp.max(jnp.abs(out - ref))}")

    # Auto-tiled path (tile chosen from the chip's VMEM), no BatchNorm.
    out_nobn = mlp_forward(x, params, use_batch_norm=False)
    out_nobn = jax.block_until_ready(out_nobn)
    ref_nobn = reference_forward(x, params, use_batch_norm=False)
    assert jnp.allclose(out_nobn, ref_nobn, atol=5e-2, rtol=5e-2), (
        f"no-BN path mismatch: max abs err {jnp.max(jnp.abs(out_nobn - ref_nobn))}")

    print("KERNEL_OK")
</pallas_src>

<mosaic_0001>
module attributes {stable_mosaic.version = 11 : i64} {
  func.func @mlp_kernel(%arg0: i32, %arg1: memref<8x32xf32, #tpu.memory_space<vmem>>, %arg2: memref<32x128xbf16, #tpu.memory_space<vmem>>, %arg3: memref<1x128xf32, #tpu.memory_space<vmem>>, %arg4: memref<128x128xbf16, #tpu.memory_space<vmem>>, %arg5: memref<1x128xf32, #tpu.memory_space<vmem>>, %arg6: memref<128x128xbf16, #tpu.memory_space<vmem>>, %arg7: memref<1x128xf32, #tpu.memory_space<vmem>>, %arg8: memref<128x16xbf16, #tpu.memory_space<vmem>>, %arg9: memref<1x16xf32, #tpu.memory_space<vmem>>, %arg10: memref<8x16xf32, #tpu.memory_space<vmem>>) attributes {dimension_semantics = [#tpu.dimension_semantics<parallel>], iteration_bounds = array<i64: 4>, scalar_prefetch = 0 : i64, scratch_operands = 0 : i64, tpu.core_type = #tpu.core_type<tc>, window_params = [{transform_indices = @transform_0, window_bounds = array<i64: 8, 32>}, {pipeline_mode = #tpu.pipeline_mode<synchronous>, transform_indices = @transform_1, window_bounds = array<i64: 32, 128>}, {pipeline_mode = #tpu.pipeline_mode<synchronous>, transform_indices = @transform_2, window_bounds = array<i64: 1, 128>}, {pipeline_mode = #tpu.pipeline_mode<synchronous>, transform_indices = @transform_3, window_bounds = array<i64: 128, 128>}, {pipeline_mode = #tpu.pipeline_mode<synchronous>, transform_indices = @transform_4, window_bounds = array<i64: 1, 128>}, {pipeline_mode = #tpu.pipeline_mode<synchronous>, transform_indices = @transform_5, window_bounds = array<i64: 128, 128>}, {pipeline_mode = #tpu.pipeline_mode<synchronous>, transform_indices = @transform_6, window_bounds = array<i64: 1, 128>}, {pipeline_mode = #tpu.pipeline_mode<synchronous>, transform_indices = @transform_7, window_bounds = array<i64: 128, 16>}, {pipeline_mode = #tpu.pipeline_mode<synchronous>, transform_indices = @transform_8, window_bounds = array<i64: 1, 16>}, {transform_indices = @transform_9, window_bounds = array<i64: 8, 16>}]} {
    %c0 = arith.constant 0 : index
    %c0_0 = arith.constant 0 : index
    %0 = vector.load %arg1[%c0, %c0_0] : memref<8x32xf32, #tpu.memory_space<vmem>>, vector<8x32xf32>
    %1 = arith.truncf %0 : vector<8x32xf32> to vector<8x32xbf16>
    %c0_1 = arith.constant 0 : index
    %c0_2 = arith.constant 0 : index
    %2 = vector.load %arg2[%c0_1, %c0_2] : memref<32x128xbf16, #tpu.memory_space<vmem>>, vector<32x128xbf16>
    %cst = arith.constant dense<0.000000e+00> : vector<8x128xf32>
    %3 = tpu.matmul %1, %2, %cst {dimension_numbers = #tpu.dot_dimension_numbers<[1], [0], [0], [1], [0, 0, 1, 1], [], []>} : vector<8x32xbf16>, vector<32x128xbf16>, vector<8x128xf32> -> vector<8x128xf32>
    %c0_3 = arith.constant 0 : index
    %c0_4 = arith.constant 0 : index
    %4 = vector.load %arg3[%c0_3, %c0_4] : memref<1x128xf32, #tpu.memory_space<vmem>>, vector<1x128xf32>
    %5 = vector.broadcast %4 : vector<1x128xf32> to vector<8x128xf32>
    %6 = arith.addf %3, %5 : vector<8x128xf32>
    %cst_5 = arith.constant 0.000000e+00 : f32
    %7 = vector.broadcast %cst_5 : f32 to vector<8x128xf32>
    %8 = arith.maximumf %6, %7 : vector<8x128xf32>
    %9 = arith.truncf %8 : vector<8x128xf32> to vector<8x128xbf16>
    %c0_6 = arith.constant 0 : index
    %c0_7 = arith.constant 0 : index
    %10 = vector.load %arg4[%c0_6, %c0_7] : memref<128x128xbf16, #tpu.memory_space<vmem>>, vector<128x128xbf16>
    %cst_8 = arith.constant dense<0.000000e+00> : vector<8x128xf32>
    %11 = tpu.matmul %9, %10, %cst_8 {dimension_numbers = #tpu.dot_dimension_numbers<[1], [0], [0], [1], [0, 0, 1, 1], [], []>} : vector<8x128xbf16>, vector<128x128xbf16>, vector<8x128xf32> -> vector<8x128xf32>
    %c0_9 = arith.constant 0 : index
    %c0_10 = arith.constant 0 : index
    %12 = vector.load %arg5[%c0_9, %c0_10] : memref<1x128xf32, #tpu.memory_space<vmem>>, vector<1x128xf32>
    %13 = vector.broadcast %12 : vector<1x128xf32> to vector<8x128xf32>
    %14 = arith.addf %11, %13 : vector<8x128xf32>
    %cst_11 = arith.constant 0.000000e+00 : f32
    %15 = vector.broadcast %cst_11 : f32 to vector<8x128xf32>
    %16 = arith.maximumf %14, %15 : vector<8x128xf32>
    %17 = arith.truncf %16 : vector<8x128xf32> to vector<8x128xbf16>
    %c0_12 = arith.constant 0 : index
    %c0_13 = arith.constant 0 : index
    %18 = vector.load %arg6[%c0_12, %c0_13] : memref<128x128xbf16, #tpu.memory_space<vmem>>, vector<128x128xbf16>
    %cst_14 = arith.constant dense<0.000000e+00> : vector<8x128xf32>
    %19 = tpu.matmul %17, %18, %cst_14 {dimension_numbers = #tpu.dot_dimension_numbers<[1], [0], [0], [1], [0, 0, 1, 1], [], []>} : vector<8x128xbf16>, vector<128x128xbf16>, vector<8x128xf32> -> vector<8x128xf32>
    %c0_15 = arith.constant 0 : index
    %c0_16 = arith.constant 0 : index
    %20 = vector.load %arg7[%c0_15, %c0_16] : memref<1x128xf32, #tpu.memory_space<vmem>>, vector<1x128xf32>
    %21 = vector.broadcast %20 : vector<1x128xf32> to vector<8x128xf32>
    %22 = arith.addf %19, %21 : vector<8x128xf32>
    %cst_17 = arith.constant 0.000000e+00 : f32
    %23 = vector.broadcast %cst_17 : f32 to vector<8x128xf32>
    %24 = arith.maximumf %22, %23 : vector<8x128xf32>
    %25 = arith.truncf %24 : vector<8x128xf32> to vector<8x128xbf16>
    %c0_18 = arith.constant 0 : index
    %c0_19 = arith.constant 0 : index
    %26 = vector.load %arg8[%c0_18, %c0_19] : memref<128x16xbf16, #tpu.memory_space<vmem>>, vector<128x16xbf16>
    %cst_20 = arith.constant dense<0.000000e+00> : vector<8x16xf32>
    %27 = tpu.matmul %25, %26, %cst_20 {dimension_numbers = #tpu.dot_dimension_numbers<[1], [0], [0], [1], [0, 0, 1, 1], [], []>} : vector<8x128xbf16>, vector<128x16xbf16>, vector<8x16xf32> -> vector<8x16xf32>
    %c0_21 = arith.constant 0 : index
    %c0_22 = arith.constant 0 : index
    %28 = vector.load %arg9[%c0_21, %c0_22] : memref<1x16xf32, #tpu.memory_space<vmem>>, vector<1x16xf32>
    %29 = vector.broadcast %28 : vector<1x16xf32> to vector<8x16xf32>
    %30 = arith.addf %27, %29 : vector<8x16xf32>
    %c0_23 = arith.constant 0 : index
    %c0_24 = arith.constant 0 : index
    %31 = vector.load %arg10[%c0_23, %c0_24] : memref<8x16xf32, #tpu.memory_space<vmem>>, vector<8x16xf32>
    tpu.vector_store %arg10[%c0_23, %c0_24], %30 {strides = array<i32>} : memref<8x16xf32, #tpu.memory_space<vmem>>, vector<8x16xf32>,
    return
  }
  func.func @transform_0(%arg0: i32) -> (i32, i32) {
    %c0_i32 = arith.constant 0 : i32
    %c0_i32_0 = arith.constant 0 : i32
    return %arg0, %c0_i32 : i32, i32
  }
  func.func @transform_1(%arg0: i32) -> (i32, i32) {
    %c0_i32 = arith.constant 0 : i32
    %c0_i32_0 = arith.constant 0 : i32
    %c0_i32_1 = arith.constant 0 : i32
    return %c0_i32, %c0_i32_0 : i32, i32
  }
  func.func @transform_2(%arg0: i32) -> (i32, i32) {
    %c0_i32 = arith.constant 0 : i32
    %c0_i32_0 = arith.constant 0 : i32
    %c0_i32_1 = arith.constant 0 : i32
    return %c0_i32, %c0_i32_0 : i32, i32
  }
  func.func @transform_3(%arg0: i32) -> (i32, i32) {
    %c0_i32 = arith.constant 0 : i32
    %c0_i32_0 = arith.constant 0 : i32
    %c0_i32_1 = arith.constant 0 : i32
    return %c0_i32, %c0_i32_0 : i32, i32
  }
  func.func @transform_4(%arg0: i32) -> (i32, i32) {
    %c0_i32 = arith.constant 0 : i32
    %c0_i32_0 = arith.constant 0 : i32
    %c0_i32_1 = arith.constant 0 : i32
    return %c0_i32, %c0_i32_0 : i32, i32
  }
  func.func @transform_5(%arg0: i32) -> (i32, i32) {
    %c0_i32 = arith.constant 0 : i32
    %c0_i32_0 = arith.constant 0 : i32
    %c0_i32_1 = arith.constant 0 : i32
    return %c0_i32, %c0_i32_0 : i32, i32
  }
  func.func @transform_6(%arg0: i32) -> (i32, i32) {
    %c0_i32 = arith.constant 0 : i32
    %c0_i32_0 = arith.constant 0 : i32
    %c0_i32_1 = arith.constant 0 : i32
    return %c0_i32, %c0_i32_0 : i32, i32
  }
  func.func @transform_7(%arg0: i32) -> (i32, i32) {
    %c0_i32 = arith.constant 0 : i32
    %c0_i32_0 = arith.constant 0 : i32
    %c0_i32_1 = arith.constant 0 : i32
    return %c0_i32, %c0_i32_0 : i32, i32
  }
  func.func @transform_8(%arg0: i32) -> (i32, i32) {
    %c0_i32 = arith.constant 0 : i32
    %c0_i32_0 = arith.constant 0 : i32
    %c0_i32_1 = arith.constant 0 : i32
    return %c0_i32, %c0_i32_0 : i32, i32
  }
  func.func @transform_9(%arg0: i32) -> (i32, i32) {
    %c0_i32 = arith.constant 0 : i32
    %c0_i32_0 = arith.constant 0 : i32
    return %arg0, %c0_i32 : i32, i32
  }
}

</mosaic_0001>

<llo_original>
// kernel: tpu_custom_call.1
$region0: #{tpu_custom_call.1}
  #allocation0 [shape = 'u32[]', space=smem, size = 0x4, offset = 0x4, fixed_abs, tag = 'smem constant byte address 0x4 - core index']
  #allocation1 [shape = 'u32[144,128]{1,0:T(1,128)}', space=vmem, size = 0x12000, scoped, tag = 'internal scratch']
  %s0 = inlined_call_operand.hbm [shape: f32[32,32], index: 0, kind: input, shape index: {}]
  %s1 = inlined_call_operand.hbm [shape: bf16[32,128], index: 1, kind: input, shape index: {}]
  %s2 = inlined_call_operand.vmem [shape: f32[1,128], index: 2, kind: input, shape index: {}]
  %s3 = inlined_call_operand.vmem [shape: bf16[128,128], index: 3, kind: input, shape index: {}]
  %s4 = inlined_call_operand.vmem [shape: f32[1,128], index: 4, kind: input, shape index: {}]
  %s5 = inlined_call_operand.hbm [shape: bf16[128,128], index: 5, kind: input, shape index: {}]
  %s6 = inlined_call_operand.vmem [shape: f32[1,128], index: 6, kind: input, shape index: {}]
  %s7 = inlined_call_operand.vmem [shape: bf16[128,16], index: 7, kind: input, shape index: {}]
  %s8 = inlined_call_operand.vmem [shape: f32[1,16], index: 8, kind: input, shape index: {}]
  %s9 = inlined_call_operand.vmem [shape: f32[32,16], index: 9, kind: output, shape index: {}]
  %s10 = sld [smem:[#allocation0]]
  $region81: #{tpu_custom_call.1} parent=0
    _
  %s12 = ssub.s32 1, %s10
  %s13 = scalar_select 0, %s12, %s10
  $region1: #{tpu_custom_call.1} parent=0
    #allocation2 [shape = 'u8[8192]{0}', space=vmem, size = 0x2000, scoped, tag = 'input window, operand 0']
    #allocation3 [shape = 's32[2]{0}', space=sflag, size = 0x8, scoped, tag = 'scoped memory for tpu_custom_call.1']
    #allocation4 [shape = 'u8[8192]{0}', space=vmem, size = 0x2000, scoped, tag = 'input window, operand 1, single buffered']
    #allocation5 [shape = 's32[1]{0}', space=sflag, size = 0x4, scoped, tag = 'scoped memory for tpu_custom_call.1']
    #allocation6 [shape = 'u8[32768]{0}', space=vmem, size = 0x8000, scoped, tag = 'input window, operand 5, single buffered']
    %14 = vsyncpa [#allocation3], 0
    %s15 = scalar_lea.sflag [#allocation3], 1
    %16 = vsyncpa %s15, 0
    %17 = vsyncpa [#allocation5], 0
    loop: start=0, step=1, limit=6
    $region2: #{tpu_custom_call.1} parent=1 // loop_pre_header
      _
    $region3: #{tpu_custom_call.1} parent=1 // loop_header
      %s19 = sphi 0, %s23
      %p20 = scmp.ge.s32.totalorder %s19, 6
      %s29 = sphi 0, %s31
      %s32 = sphi 0, %s29
      %s33 = sphi 0, %s32
      %s49 = sphi 0, %s33
      %s53 = sphi 0, %s53
      %s55 = sphi 0, %s53
      %s56 = sphi 0, %s55
      %s70 = sphi 0, %s56
      %s74 = sphi 0, %s74
      %s76 = sphi 0, %s74
      %s77 = sphi 0, %s76
      %s91 = sphi 0, %s77
      %s95 = sphi 0, %s95
      %s97 = sphi 0, %s95
      %s98 = sphi 0, %s97
      %s112 = sphi 0, %s98
      %s116 = sphi 0, %s116
      %s118 = sphi 0, %s116
      %s119 = sphi 0, %s118
      %s133 = sphi 0, %s119
      %s137 = sphi 0, %s137
      %s139 = sphi 0, %s137
      %s140 = sphi 0, %s139
      %s154 = sphi 0, %s140
      %s158 = sphi 0, %s158
      %s160 = sphi 0, %s158
      %s161 = sphi 0, %s160
      %s175 = sphi 0, %s161
      %s179 = sphi 0, %s179
      %s181 = sphi 0, %s179
      %s182 = sphi 0, %s181
      %s196 = sphi 0, %s182
      %s200 = sphi 0, %s200
      %s202 = sphi 0, %s200
      %s203 = sphi 0, %s202
      %s217 = sphi 0, %s203
      %s223 = sphi 0, %s225
      %s226 = sphi 0, %s223
      %s227 = sphi 0, %s226
      %s243 = sphi 0, %s227
    $region4: #{tpu_custom_call.1} parent=1 // loop_header_branch
      %22 = sbr.rel (%p20) target = $region8
    $region5: #{tpu_custom_call.1} parent=1 // loop_body
      %s24 = ssub.s32 %s19, 1
      %s25 = ssub.s32 %s19, 2
      %s26 = sadd.s32 %s19, 1
      %s27 = ssub.s32 %s19, %s26
      %p28 = scmp.eq.s32.totalorder %s27, 0
      %s30 = sadd.s32 %s29, 1
      %s31 = scalar_select %p28, %s29, %s30
      %p34 = pneg %p28
      %p35 = scmp.eq.s32.totalorder %s19, 3
      %p36 = por %p34, %p35
      %p37 = scmp.ne.s32.totalorder %s29, %s32
      %p38 = scmp.eq.s32.totalorder %s19, 0
      %p39 = por %p37, %p38
      %p40 = scmp.ne.s32.totalorder %s29, %s32
      %p41 = scmp.eq.s32.totalorder %s24, 3
      %p42 = por %p40, %p41
      %p43 = scmp.ne.s32.totalorder %s32, %s33
      %p44 = scmp.eq.s32.totalorder %s24, 0
      %p45 = por %p43, %p44
      %p46 = scmp.ne.s32.totalorder %s32, %s33
      %p47 = scmp.eq.s32.totalorder %s25, 3
      %p48 = por %p46, %p47
      %p50 = scmp.ne.s32.totalorder %s33, %s49
      %p51 = scmp.eq.s32.totalorder %s25, 0
      %p52 = por %p50, %p51
      %s54 = sadd.s32 %s53, 1
      %p57 = scmp.eq.s32.totalorder %s19, 3
      %p58 = scmp.ne.s32.totalorder %s53, %s55
      %p59 = scmp.eq.s32.totalorder %s19, 0
      %p60 = por %p58, %p59
      %p61 = scmp.ne.s32.totalorder %s53, %s55
      %p62 = scmp.eq.s32.totalorder %s24, 3
      %p63 = por %p61, %p62
      %p64 = scmp.ne.s32.totalorder %s55, %s56
      %p65 = scmp.eq.s32.totalorder %s24, 0
      %p66 = por %p64, %p65
      %p67 = scmp.ne.s32.totalorder %s55, %s56
      %p68 = scmp.eq.s32.totalorder %s25, 3
      %p69 = por %p67, %p68
      %p71 = scmp.ne.s32.totalorder %s56, %s70
      %p72 = scmp.eq.s32.totalorder %s25, 0
      %p73 = por %p71, %p72
      %s75 = sadd.s32 %s74, 1
      %p78 = scmp.eq.s32.totalorder %s19, 3
      %p79 = scmp.ne.s32.totalorder %s74, %s76
      %p80 = scmp.eq.s32.totalorder %s19, 0
      %p81 = por %p79, %p80
      %p82 = scmp.ne.s32.totalorder %s74, %s76
      %p83 = scmp.eq.s32.totalorder %s24, 3
      %p84 = por %p82, %p83
      %p85 = scmp.ne.s32.totalorder %s76, %s77
      %p86 = scmp.eq.s32.totalorder %s24, 0
      %p87 = por %p85, %p86
      %p88 = scmp.ne.s32.totalorder %s76, %s77
      %p89 = scmp.eq.s32.totalorder %s25, 3
      %p90 = por %p88, %p89
      %p92 = scmp.ne.s32.totalorder %s77, %s91
      %p93 = scmp.eq.s32.totalorder %s25, 0
      %p94 = por %p92, %p93
      %s96 = sadd.s32 %s95, 1
      %p99 = scmp.eq.s32.totalorder %s19, 3
      %p100 = scmp.ne.s32.totalorder %s95, %s97
      %p101 = scmp.eq.s32.totalorder %s19, 0
      %p102 = por %p100, %p101
      %p103 = scmp.ne.s32.totalorder %s95, %s97
      %p104 = scmp.eq.s32.totalorder %s24, 3
      %p105 = por %p103, %p104
      %p106 = scmp.ne.s32.totalorder %s97, %s98
      %p107 = scmp.eq.s32.totalorder %s24, 0
      %p108 = por %p106, %p107
      %p109 = scmp.ne.s32.totalorder %s97, %s98
      %p110 = scmp.eq.s32.totalorder %s25, 3
      %p111 = por %p109, %p110
      %p113 = scmp.ne.s32.totalorder %s98, %s112
      %p114 = scmp.eq.s32.totalorder %s25, 0
      %p115 = por %p113, %p114
      %s117 = sadd.s32 %s116, 1
      %p120 = scmp.eq.s32.totalorder %s19, 3
      %p121 = scmp.ne.s32.totalorder %s116, %s118
      %p122 = scmp.eq.s32.totalorder %s19, 0
      %p123 = por %p121, %p122
      %p124 = scmp.ne.s32.totalorder %s116, %s118
      %p125 = scmp.eq.s32.totalorder %s24, 3
      %p126 = por %p124, %p125
      %p127 = scmp.ne.s32.totalorder %s118, %s119
      %p128 = scmp.eq.s32.totalorder %s24, 0
      %p129 = por %p127, %p128
      %p130 = scmp.ne.s32.totalorder %s118, %s119
      %p131 = scmp.eq.s32.totalorder %s25, 3
      %p132 = por %p130, %p131
      %p134 = scmp.ne.s32.totalorder %s119, %s133
      %p135 = scmp.eq.s32.totalorder %s25, 0
      %p136 = por %p134, %p135
      %s138 = sadd.s32 %s137, 1
      %p141 = scmp.eq.s32.totalorder %s19, 3
      %p142 = scmp.ne.s32.totalorder %s137, %s139
      %p143 = scmp.eq.s32.totalorder %s19, 0
      %p144 = por %p142, %p143
      %p145 = scmp.ne.s32.totalorder %s137, %s139
      %p146 = scmp.eq.s32.totalorder %s24, 3
      %p147 = por %p145, %p146
      %p148 = scmp.ne.s32.totalorder %s139, %s140
      %p149 = scmp.eq.s32.totalorder %s24, 0
      %p150 = por %p148, %p149
      %p151 = scmp.ne.s32.totalorder %s139, %s140
      %p152 = scmp.eq.s32.totalorder %s25, 3
      %p153 = por %p151, %p152
      %p155 = scmp.ne.s32.totalorder %s140, %s154
      %p156 = scmp.eq.s32.totalorder %s25, 0
      %p157 = por %p155, %p156
      %s159 = sadd.s32 %s158, 1
      %p162 = scmp.eq.s32.totalorder %s19, 3
      %p163 = scmp.ne.s32.totalorder %s158, %s160
      %p164 = scmp.eq.s32.totalorder %s19, 0
      %p165 = por %p163, %p164
      %p166 = scmp.ne.s32.totalorder %s158, %s160
      %p167 = scmp.eq.s32.totalorder %s24, 3
      %p168 = por %p166, %p167
      %p169 = scmp.ne.s32.totalorder %s160, %s161
      %p170 = scmp.eq.s32.totalorder %s24, 0
      %p171 = por %p169, %p170
      %p172 = scmp.ne.s32.totalorder %s160, %s161
      %p173 = scmp.eq.s32.totalorder %s25, 3
      %p174 = por %p172, %p173
      %p176 = scmp.ne.s32.totalorder %s161, %s175
      %p177 = scmp.eq.s32.totalorder %s25, 0
      %p178 = por %p176, %p177
      %s180 = sadd.s32 %s179, 1
      %p183 = scmp.eq.s32.totalorder %s19, 3
      %p184 = scmp.ne.s32.totalorder %s179, %s181
      %p185 = scmp.eq.s32.totalorder %s19, 0
      %p186 = por %p184, %p185
      %p187 = scmp.ne.s32.totalorder %s179, %s181
      %p188 = scmp.eq.s32.totalorder %s24, 3
      %p189 = por %p187, %p188
      %p190 = scmp.ne.s32.totalorder %s181, %s182
      %p191 = scmp.eq.s32.totalorder %s24, 0
      %p192 = por %p190, %p191
      %p193 = scmp.ne.s32.totalorder %s181, %s182
      %p194 = scmp.eq.s32.totalorder %s25, 3
      %p195 = por %p193, %p194
      %p197 = scmp.ne.s32.totalorder %s182, %s196
      %p198 = scmp.eq.s32.totalorder %s25, 0
      %p199 = por %p197, %p198
      %s201 = sadd.s32 %s200, 1
      %p204 = scmp.eq.s32.totalorder %s19, 3
      %p205 = scmp.ne.s32.totalorder %s200, %s202
      %p206 = scmp.eq.s32.totalorder %s19, 0
      %p207 = por %p205, %p206
      %p208 = scmp.ne.s32.totalorder %s200, %s202
      %p209 = scmp.eq.s32.totalorder %s24, 3
      %p210 = por %p208, %p209
      %p211 = scmp.ne.s32.totalorder %s202, %s203
      %p212 = scmp.eq.s32.totalorder %s24, 0
      %p213 = por %p211, %p212
      %p214 = scmp.ne.s32.totalorder %s202, %s203
      %p215 = scmp.eq.s32.totalorder %s25, 3
      %p216 = por %p214, %p215
      %p218 = scmp.ne.s32.totalorder %s203, %s217
      %p219 = scmp.eq.s32.totalorder %s25, 0
      %p220 = por %p218, %p219
      %s221 = ssub.s32 %s19, %s26
      %p222 = scmp.eq.s32.totalorder %s221, 0
      %s224 = sadd.s32 %s223, 1
      %s225 = scalar_select %p222, %s223, %s224
      %p228 = pneg %p222
      %p229 = scmp.eq.s32.totalorder %s19, 3
      %p230 = por %p228, %p229
      %p231 = scmp.ne.s32.totalorder %s223, %s226
      %p232 = scmp.eq.s32.totalorder %s19, 0
      %p233 = por %p231, %p232
      %p234 = scmp.ne.s32.totalorder %s223, %s226
      %p235 = scmp.eq.s32.totalorder %s24, 3
      %p236 = por %p234, %p235
      %p237 = scmp.ne.s32.totalorder %s226, %s227
      %p238 = scmp.eq.s32.totalorder %s24, 0
      %p239 = por %p237, %p238
      %p240 = scmp.ne.s32.totalorder %s226, %s227
      %p241 = scmp.eq.s32.totalorder %s25, 3
      %p242 = por %p240, %p241
      %p244 = scmp.ne.s32.totalorder %s227, %s243
      %p245 = scmp.eq.s32.totalorder %s25, 0
      %p246 = por %p244, %p245
      %p247 = scmp.le.s32.totalorder 1, %s19
      %p248 = scmp.lt.s32.totalorder %s19, 5
      %p249 = pnand %p247, %p248
      %p250 = pneg %p249
      // Predicated region
      $region9: #{tpu_custom_call.1} parent=5 // pred_check
        _
      $region10: #{tpu_custom_call.1} parent=5 // pred_check_branch
        %252 = sbr.rel (%p249) target = $region12
      $region11: #{tpu_custom_call.1} parent=5 // pred_region
        %s253 = ssub.s32 %s19, 1
        // Predicated region
        $region13: #{tpu_custom_call.1} parent=11 // pred_check
          %p254 = pneg %p66
        $region14: #{tpu_custom_call.1} parent=11 // pred_check_branch
          %256 = sbr.rel (%p254) target = $region16
        $region15: #{tpu_custom_call.1} parent=11 // pred_region
          %s258 = ssub.s32 256, 256
          %259 = vsyncadd [#allocation5], %s258
          %s260 = sshll.u32 [#allocation4], 4
          %s261 = int_to_ptr.vmem [resolvable:$true] %s260
          %266 = dma.hbm_to_vmem [thread:$0]  %s1, 256, %s261, [#allocation5], 64, 64, 4
        $region16: #{tpu_custom_call.1} parent=11 // pred_fallthru
          _
        // Predicated region
        $region17: #{tpu_custom_call.1} parent=11 // pred_check
          %p267 = pneg %p87
        $region18: #{tpu_custom_call.1} parent=11 // pred_check_branch
          %269 = sbr.rel (%p267) target = $region20
        $region19: #{tpu_custom_call.1} parent=11 // pred_region
          _
        $region20: #{tpu_custom_call.1} parent=11 // pred_fallthru
          _
        // Predicated region
        $region21: #{tpu_custom_call.1} parent=11 // pred_check
          %p270 = pneg %p108
        $region22: #{tpu_custom_call.1} parent=11 // pred_check_branch
          %272 = sbr.rel (%p270) target = $region24
        $region23: #{tpu_custom_call.1} parent=11 // pred_region
          _
        $region24: #{tpu_custom_call.1} parent=11 // pred_fallthru
          _
        // Predicated region
        $region25: #{tpu_custom_call.1} parent=11 // pred_check
          %p273 = pneg %p129
        $region26: #{tpu_custom_call.1} parent=11 // pred_check_branch
          %275 = sbr.rel (%p273) target = $region28
        $region27: #{tpu_custom_call.1} parent=11 // pred_region
          _
        $region28: #{tpu_custom_call.1} parent=11 // pred_fallthru
          _
        // Predicated region
        $region29: #{tpu_custom_call.1} parent=11 // pred_check
          %p276 = pneg %p150
        $region30: #{tpu_custom_call.1} parent=11 // pred_check_branch
          %278 = sbr.rel (%p276) target = $region32
        $region31: #{tpu_custom_call.1} parent=11 // pred_region
          %s280 = ssub.s32 1024, 1024
          %281 = vsyncadd [#allocation5], %s280
          %s282 = sshll.u32 [#allocation6], 4
          %s283 = int_to_ptr.vmem [resolvable:$true] %s282
          %288 = dma.hbm_to_vmem [thread:$0]  %s5, 1024, %s283, [#allocation5], 64, 64, 4
        $region32: #{tpu_custom_call.1} parent=11 // pred_fallthru
          _
        // Predicated region
        $region33: #{tpu_custom_call.1} parent=11 // pred_check
          %p289 = pneg %p171
        $region34: #{tpu_custom_call.1} parent=11 // pred_check_branch
          %291 = sbr.rel (%p289) target = $region36
        $region35: #{tpu_custom_call.1} parent=11 // pred_region
          _
        $region36: #{tpu_custom_call.1} parent=11 // pred_fallthru
          _
        // Predicated region
        $region37: #{tpu_custom_call.1} parent=11 // pred_check
          %p292 = pneg %p192
        $region38: #{tpu_custom_call.1} parent=11 // pred_check_branch
          %294 = sbr.rel (%p292) target = $region40
        $region39: #{tpu_custom_call.1} parent=11 // pred_region
          _
        $region40: #{tpu_custom_call.1} parent=11 // pred_fallthru
          _
        // Predicated region
        $region41: #{tpu_custom_call.1} parent=11 // pred_check
          %p295 = pneg %p213
        $region42: #{tpu_custom_call.1} parent=11 // pred_check_branch
          %297 = sbr.rel (%p295) target = $region44
        $region43: #{tpu_custom_call.1} parent=11 // pred_region
          _
        $region44: #{tpu_custom_call.1} parent=11 // pred_fallthru
          _
      $region12: #{tpu_custom_call.1} parent=5 // pred_fallthru
        _
      %p298 = scmp.lt.s32.totalorder %s19, 4
      // Predicated region
      $region45: #{tpu_custom_call.1} parent=5 // pred_check
        %p299 = pneg %p298
      $region46: #{tpu_custom_call.1} parent=5 // pred_check_branch
        %301 = sbr.rel (%p299) target = $region48
      $region47: #{tpu_custom_call.1} parent=5 // pred_region
        // Predicated region
        $region49: #{tpu_custom_call.1} parent=47 // pred_check
          %p302 = pneg %p39
        $region50: #{tpu_custom_call.1} parent=47 // pred_check_branch
          %304 = sbr.rel (%p302) target = $region52
        $region51: #{tpu_custom_call.1} parent=47 // pred_region
          %s305 = sand.u32 %s29, 1
          %s306 = scalar_lea.sflag [#allocation3], %s305
          %s307 = sand.u32 %s29, 1
          %s308 = smul.addr %s307, 8
          %s309 = scalar_lea.vmem [#allocation2], %s308
          %s311 = ssub.s32 128, 128
          %312 = vsyncadd %s306, %s311
          %s313 = smul.addr %s19, 128
          %s314 = scalar_lea.hbm %s0, %s313
          %s316 = sshll.u32 %s309, 4
          %s317 = int_to_ptr.vmem [resolvable:$true] %s316
          %319 = dma.hbm_to_vmem [thread:$0]  %s314, 128, %s317, %s306
        $region52: #{tpu_custom_call.1} parent=47 // pred_fallthru
          _
      $region48: #{tpu_custom_call.1} parent=5 // pred_fallthru
        _
      %p320 = scmp.le.s32.totalorder 1, %s19
      %p321 = scmp.lt.s32.totalorder %s19, 5
      %p322 = pnand %p320, %p321
      %p323 = pneg %p322
      // Predicated region
      $region53: #{tpu_custom_call.1} parent=5 // pred_check
        _
      $region54: #{tpu_custom_call.1} parent=5 // pred_check_branch
        %325 = sbr.rel (%p322) target = $region56
      $region55: #{tpu_custom_call.1} parent=5 // pred_region
        %s326 = ssub.s32 %s19, 1
        %s327 = sand.u32 %s32, 1
        %s328 = scalar_lea.sflag [#allocation3], %s327
        %s329 = sand.u32 %s32, 1
        %s330 = smul.addr %s329, 8
        %s331 = scalar_lea.vmem [#allocation2], %s330
        // Predicated region
        $region57: #{tpu_custom_call.1} parent=55 // pred_check
          %p332 = pneg %p45
        $region58: #{tpu_custom_call.1} parent=55 // pred_check_branch
          %334 = sbr.rel (%p332) target = $region60
        $region59: #{tpu_custom_call.1} parent=55 // pred_region
          %335 = dma.done %s328, 128
        $region60: #{tpu_custom_call.1} parent=55 // pred_fallthru
          _
        // Predicated region
        $region61: #{tpu_custom_call.1} parent=55 // pred_check
          %p336 = pneg %p66
        $region62: #{tpu_custom_call.1} parent=55 // pred_check_branch
          %338 = sbr.rel (%p336) target = $region64
        $region63: #{tpu_custom_call.1} parent=55 // pred_region
          %339 = dma.done [#allocation5], 256
        $region64: #{tpu_custom_call.1} parent=55 // pred_fallthru
          _
        // Predicated region
        $region65: #{tpu_custom_call.1} parent=55 // pred_check
          %p340 = pneg %p150
        $region66: #{tpu_custom_call.1} parent=55 // pred_check_branch
          %342 = sbr.rel (%p340) target = $region68
        $region67: #{tpu_custom_call.1} parent=55 // pred_region
          %343 = dma.done [#allocation5], 1024
        $region68: #{tpu_custom_call.1} parent=55 // pred_fallthru
          _
        %s344 = sand.u32 %s32, 1
        %s345 = scalar_lea.sflag [#allocation3], %s344
        %s346 = sand.u32 %s32, 1
        %s347 = smul.addr %s346, 8
        %s348 = scalar_lea.vmem [#allocation2], %s347
        %p349 = pneg %p45
        %p350 = pneg %p42
        %p351 = pneg %p66
        %p352 = pneg %p63
        %p353 = pneg %p87
        %p354 = pneg %p84
        %p355 = pneg %p108
        %p356 = pneg %p105
        %p357 = pneg %p129
        %p358 = pneg %p126
        %p359 = pneg %p150
        %p360 = pneg %p147
        %p361 = pneg %p171
        %p362 = pneg %p168
        %p363 = pneg %p192
        %p364 = pneg %p189
        %p365 = pneg %p213
        %p366 = pneg %p210
        %p367 = pneg %p239
        %p368 = pneg %p236
        %p369 = scmp.lt.s32.totalorder %s24, 3
        %s370 = scalar_select %p369, %s24, 3
        %s371 = smul.addr %s370, 8
        %s372 = scalar_lea.vmem %s9, %s371
        %p373 = scmp.lt.s32.totalorder %s24, 3
        %s374 = scalar_select %p373, %s24, 3
        %s375 = smul.addr %s374, 8
        %s376 = scalar_lea.vmem %s9, %s375
        %v378 = vld [vmem:[%s331] sm:$0xff]
        %v379 = vpack.c.bf16 %v378, %v378
        %v380 = vld [vmem:[#allocation4] sm:$0xf]
        %v381 = vld [vmem:[#allocation4 + $0x4] sm:$0xf]
        %v382 = vld [vmem:[#allocation4 + $0x8] sm:$0xf]
        %v383 = vld [vmem:[#allocation4 + $0xc] sm:$0xf]
        %v384 = vld [vmem:[%s2] sm:$0x1]
        %v386 = vlaneseq
        %v387 = vshrl.u32 %v386, 7
        %v388 = vsub.s32 0, %v387
        %v389 = vrot.slane %v384, %v388
        %v395 = vunpack.c.l.b16 %v380
        %v396 = vunpack.c.l.b16 %v381
        %v397 = vunpack.c.l.b16 %v382
        %v398 = vunpack.c.l.b16 %v383
        %v399 = vpack.c.b16 %v396, %v395
        %v400 = vpack.c.b16 %v398, %v397
        %vm403 = vcmask 261120
        %v405 = vsel %vm403, %v379, 0
        %407 = vmatprep.subr.bf16.mxu0 0
        %408 = vmatpush1.bf16.msra.mxu0 0
        %409 = vmatprep.subr.bf16.mxu0 0
        %410 = vmatpush1.bf16.msra.mxu0 0
        %411 = vmatprep.subr.bf16.mxu0 0
        %412 = vmatpush1.bf16.msra.mxu0 0
        %413 = vmatprep.subr.bf16.mxu0 0
        %414 = vmatpush1.bf16.msra.mxu0 0
        %415 = vmatprep.subr.bf16.mxu0 0
        %416 = vmatpush1.bf16.msra.mxu0 0
        %417 = vmatprep.subr.bf16.mxu0 0
        %418 = vmatpush1.bf16.msra.mxu0 0
        %419 = vmatprep.subr.bf16.mxu0 0
        %420 = vmatpush1.bf16.msra.mxu0 %v400
        %421 = vmatprep.subr.bf16.mxu0 0
        %422 = vmatpush1.bf16.msra.mxu0 %v399
        %423 = vmatprep.subr.bf16.mxu0 0
        %424 = vmatpush2.bf16.msra.mxu0 0
        %425 = vmatprep.subr.bf16.mxu0 0
        %426 = vmatpush2.bf16.msra.mxu0 0
        %427 = vmatprep.subr.bf16.mxu0 0
        %428 = vmatpush2.bf16.msra.mxu0 0
        %429 = vmatprep.subr.bf16.mxu0 0
        %430 = vmatpush2.bf16.msra.mxu0 0
        %431 = vmatprep.subr.bf16.mxu0 0
        %432 = vmatpush2.bf16.msra.mxu0 0
        %433 = vmatprep.subr.bf16.mxu0 0
        %434 = vmatpush2.bf16.msra.mxu0 0
        %435 = vmatprep.subr.bf16.mxu0 0
        %436 = vmatpush2.bf16.msra.mxu0 0
        %437 = vmatprep.subr.bf16.mxu0 0
        %438 = vmatpush2.bf16.msra.mxu0 0
        %439 = vmatprep.mubr.bf16.mxu0 0
        %440 = vmatmul.mubr.bf16.gmra.mxu0 %v405
        %v441 = vpop.f32.mrf.mxu0
        %v442 = vadd.f32 %v389, %v441
        %v443 = vpop.f32.mrf.mxu0
        %v444 = vpop.f32.mrf.mxu0
        %v445 = vpop.f32.mrf.mxu0
        %446 = vdwg.mxu0
        %v447 = vmax.f32 %v442, 0.0
        %v448 = vpack.c.bf16 %v447, %v447
        %v449 = vld [vmem:[%s3] sm:$0xf]
        %v450 = vld [vmem:[%s3 + $0x4] sm:$0xf]
        %v451 = vld [vmem:[%s3 + $0x8] sm:$0xf]
        %v452 = vld [vmem:[%s3 + $0xc] sm:$0xf]
        %v453 = vld [vmem:[%s3 + $0x10] sm:$0xf]
        %v454 = vld [vmem:[%s3 + $0x14] sm:$0xf]
        %v455 = vld [vmem:[%s3 + $0x18] sm:$0xf]
        %v456 = vld [vmem:[%s3 + $0x1c] sm:$0xf]
        %v457 = vld [vmem:[%s3 + $0x20] sm:$0xf]
        %v458 = vld [vmem:[%s3 + $0x24] sm:$0xf]
        %v459 = vld [vmem:[%s3 + $0x28] sm:$0xf]
        %v460 = vld [vmem:[%s3 + $0x2c] sm:$0xf]
        %v461 = vld [vmem:[%s3 + $0x30] sm:$0xf]
        %v462 = vld [vmem:[%s3 + $0x34] sm:$0xf]
        %v463 = vld [vmem:[%s3 + $0x38] sm:$0xf]
        %v464 = vld [vmem:[%s3 + $0x3c] sm:$0xf]
        %v465 = vld [vmem:[%s4] sm:$0x1]
        %v467 = vlaneseq
        %v468 = vshrl.u32 %v467, 7
        %v469 = vsub.s32 0, %v468
        %v470 = vrot.slane %v465, %v469
        %v488 = vunpack.c.l.b16 %v449
        %v489 = vunpack.c.l.b16 %v450
        %v490 = vunpack.c.l.b16 %v451
        %v491 = vunpack.c.l.b16 %v452
        %v492 = vunpack.c.l.b16 %v453
        %v493 = vunpack.c.l.b16 %v454
        %v494 = vunpack.c.l.b16 %v455
        %v495 = vunpack.c.l.b16 %v456
        %v496 = vunpack.c.l.b16 %v457
        %v497 = vunpack.c.l.b16 %v458
        %v498 = vunpack.c.l.b16 %v459
        %v499 = vunpack.c.l.b16 %v460
        %v500 = vunpack.c.l.b16 %v461
        %v501 = vunpack.c.l.b16 %v462
        %v502 = vunpack.c.l.b16 %v463
        %v503 = vunpack.c.l.b16 %v464
        %v504 = vpack.c.b16 %v489, %v488
        %v505 = vpack.c.b16 %v491, %v490
        %v506 = vpack.c.b16 %v493, %v492
        %v507 = vpack.c.b16 %v495, %v494
        %v508 = vpack.c.b16 %v497, %v496
        %v509 = vpack.c.b16 %v499, %v498
        %v510 = vpack.c.b16 %v501, %v500
        %v511 = vpack.c.b16 %v503, %v502
        %520 = vmatprep.subr.bf16.mxu0 0
        %521 = vmatpush1.bf16.msra.mxu0 %v511
        %522 = vmatprep.subr.bf16.mxu0 0
        %523 = vmatpush1.bf16.msra.mxu0 %v510
        %524 = vmatprep.subr.bf16.mxu0 0
        %525 = vmatpush1.bf16.msra.mxu0 %v509
        %526 = vmatprep.subr.bf16.mxu0 0
        %527 = vmatpush1.bf16.msra.mxu0 %v508
        %528 = vmatprep.subr.bf16.mxu0 0
        %529 = vmatpush1.bf16.msra.mxu0 %v507
        %530 = vmatprep.subr.bf16.mxu0 0
        %531 = vmatpush1.bf16.msra.mxu0 %v506
        %532 = vmatprep.subr.bf16.mxu0 0
        %533 = vmatpush1.bf16.msra.mxu0 %v505
        %534 = vmatprep.subr.bf16.mxu0 0
        %535 = vmatpush1.bf16.msra.mxu0 %v504
        %536 = vmatprep.subr.bf16.mxu0 0
        %537 = vmatpush2.bf16.msra.mxu0 0
        %538 = vmatprep.subr.bf16.mxu0 0
        %539 = vmatpush2.bf16.msra.mxu0 0
        %540 = vmatprep.subr.bf16.mxu0 0
        %541 = vmatpush2.bf16.msra.mxu0 0
        %542 = vmatprep.subr.bf16.mxu0 0
        %543 = vmatpush2.bf16.msra.mxu0 0
        %544 = vmatprep.subr.bf16.mxu0 0
        %545 = vmatpush2.bf16.msra.mxu0 0
        %546 = vmatprep.subr.bf16.mxu0 0
        %547 = vmatpush2.bf16.msra.mxu0 0
        %548 = vmatprep.subr.bf16.mxu0 0
        %549 = vmatpush2.bf16.msra.mxu0 0
        %550 = vmatprep.subr.bf16.mxu0 0
        %551 = vmatpush2.bf16.msra.mxu0 0
        %552 = vmatprep.mubr.bf16.mxu0 0
        %553 = vmatmul.mubr.bf16.gmra.mxu0 %v448
        %v554 = vpop.f32.mrf.mxu0
        %v555 = vadd.f32 %v470, %v554
        %v556 = vpop.f32.mrf.mxu0
        %v557 = vpop.f32.mrf.mxu0
        %v558 = vpop.f32.mrf.mxu0
        %559 = vdwg.mxu0
        %v560 = vmax.f32 %v555, 0.0
        %v561 = vpack.c.bf16 %v560, %v560
        %v562 = vld [vmem:[#allocation6] sm:$0xf]
        %v563 = vld [vmem:[#allocation6 + $0x4] sm:$0xf]
        %v564 = vld [vmem:[#allocation6 + $0x8] sm:$0xf]
        %v565 = vld [vmem:[#allocation6 + $0xc] sm:$0xf]
        %v566 = vld [vmem:[#allocation6 + $0x10] sm:$0xf]
        %v567 = vld [vmem:[#allocation6 + $0x14] sm:$0xf]
        %v568 = vld [vmem:[#allocation6 + $0x18] sm:$0xf]
        %v569 = vld [vmem:[#allocation6 + $0x1c] sm:$0xf]
        %v570 = vld [vmem:[#allocation6 + $0x20] sm:$0xf]
        %v571 = vld [vmem:[#allocation6 + $0x24] sm:$0xf]
        %v572 = vld [vmem:[#allocation6 + $0x28] sm:$0xf]
        %v573 = vld [vmem:[#allocation6 + $0x2c] sm:$0xf]
        %v574 = vld [vmem:[#allocation6 + $0x30] sm:$0xf]
        %v575 = vld [vmem:[#allocation6 + $0x34] sm:$0xf]
        %v576 = vld [vmem:[#allocation6 + $0x38] sm:$0xf]
        %v577 = vld [vmem:[#allocation6 + $0x3c] sm:$0xf]
        %v578 = vld [vmem:[%s6] sm:$0x1]
        %v580 = vlaneseq
        %v581 = vshrl.u32 %v580, 7
        %v582 = vsub.s32 0, %v581
        %v583 = vrot.slane %v578, %v582
        %v601 = vunpack.c.l.b16 %v562
        %v602 = vunpack.c.l.b16 %v563
        %v603 = vunpack.c.l.b16 %v564
        %v604 = vunpack.c.l.b16 %v565
        %v605 = vunpack.c.l.b16 %v566
        %v606 = vunpack.c.l.b16 %v567
        %v607 = vunpack.c.l.b16 %v568
        %v608 = vunpack.c.l.b16 %v569
        %v609 = vunpack.c.l.b16 %v570
        %v610 = vunpack.c.l.b16 %v571
        %v611 = vunpack.c.l.b16 %v572
        %v612 = vunpack.c.l.b16 %v573
        %v613 = vunpack.c.l.b16 %v574
        %v614 = vunpack.c.l.b16 %v575
        %v615 = vunpack.c.l.b16 %v576
        %v616 = vunpack.c.l.b16 %v577
        %v617 = vpack.c.b16 %v602, %v601
        %v618 = vpack.c.b16 %v604, %v603
        %v619 = vpack.c.b16 %v606, %v605
        %v620 = vpack.c.b16 %v608, %v607
        %v621 = vpack.c.b16 %v610, %v609
        %v622 = vpack.c.b16 %v612, %v611
        %v623 = vpack.c.b16 %v614, %v613
        %v624 = vpack.c.b16 %v616, %v615
        %633 = vmatprep.subr.bf16.mxu0 0
        %634 = vmatpush1.bf16.msra.mxu0 %v624
        %635 = vmatprep.subr.bf16.mxu0 0
        %636 = vmatpush1.bf16.msra.mxu0 %v623
        %637 = vmatprep.subr.bf16.mxu0 0
        %638 = vmatpush1.bf16.msra.mxu0 %v622
        %639 = vmatprep.subr.bf16.mxu0 0
        %640 = vmatpush1.bf16.msra.mxu0 %v621
        %641 = vmatprep.subr.bf16.mxu0 0
        %642 = vmatpush1.bf16.msra.mxu0 %v620
        %643 = vmatprep.subr.bf16.mxu0 0
        %644 = vmatpush1.bf16.msra.mxu0 %v619
        %645 = vmatprep.subr.bf16.mxu0 0
        %646 = vmatpush1.bf16.msra.mxu0 %v618
        %647 = vmatprep.subr.bf16.mxu0 0
        %648 = vmatpush1.bf16.msra.mxu0 %v617
        %649 = vmatprep.subr.bf16.mxu0 0
        %650 = vmatpush2.bf16.msra.mxu0 0
        %651 = vmatprep.subr.bf16.mxu0 0
        %652 = vmatpush2.bf16.msra.mxu0 0
        %653 = vmatprep.subr.bf16.mxu0 0
        %654 = vmatpush2.bf16.msra.mxu0 0
        %655 = vmatprep.subr.bf16.mxu0 0
        %656 = vmatpush2.bf16.msra.mxu0 0
        %657 = vmatprep.subr.bf16.mxu0 0
        %658 = vmatpush2.bf16.msra.mxu0 0
        %659 = vmatprep.subr.bf16.mxu0 0
        %660 = vmatpush2.bf16.msra.mxu0 0
        %661 = vmatprep.subr.bf16.mxu0 0
        %662 = vmatpush2.bf16.msra.mxu0 0
        %663 = vmatprep.subr.bf16.mxu0 0
        %664 = vmatpush2.bf16.msra.mxu0 0
        %665 = vmatprep.mubr.bf16.mxu0 0
        %666 = vmatmul.mubr.bf16.gmra.mxu0 %v561
        %v667 = vpop.f32.mrf.mxu0
        %v668 = vadd.f32 %v583, %v667
        %v669 = vpop.f32.mrf.mxu0
        %v670 = vpop.f32.mrf.mxu0
        %v671 = vpop.f32.mrf.mxu0
        %672 = vdwg.mxu0
        %v673 = vmax.f32 %v668, 0.0
        %v674 = vpack.c.bf16 %v673, %v673
        %v675 = vld [vmem:[%s7] sm:$0xf]
        %v676 = vld [vmem:[%s7 + $0x4] sm:$0xf]
        %v677 = vld [vmem:[%s7 + $0x8] sm:$0xf]
        %v678 = vld [vmem:[%s7 + $0xc] sm:$0xf]
        %v679 = vld [vmem:[%s7 + $0x10] sm:$0xf]
        %v680 = vld [vmem:[%s7 + $0x14] sm:$0xf]
        %v681 = vld [vmem:[%s7 + $0x18] sm:$0xf]
        %v682 = vld [vmem:[%s7 + $0x1c] sm:$0xf]
        %v683 = vld [vmem:[%s7 + $0x20] sm:$0xf]
        %v684 = vld [vmem:[%s7 + $0x24] sm:$0xf]
        %v685 = vld [vmem:[%s7 + $0x28] sm:$0xf]
        %v686 = vld [vmem:[%s7 + $0x2c] sm:$0xf]
        %v687 = vld [vmem:[%s7 + $0x30] sm:$0xf]
        %v688 = vld [vmem:[%s7 + $0x34] sm:$0xf]
        %v689 = vld [vmem:[%s7 + $0x38] sm:$0xf]
        %v690 = vld [vmem:[%s7 + $0x3c] sm:$0xf]
        %v691 = vld [vmem:[%s8] sm:$0x1]
        %v693 = vlaneseq
        %v694 = vshrl.u32 %v693, 7
        %v695 = vsub.s32 0, %v694
        %v696 = vrot.slane %v691, %v695
        %v714 = vunpack.c.l.b16 %v675
        %v715 = vunpack.c.l.b16 %v676
        %v716 = vunpack.c.l.b16 %v677
        %v717 = vunpack.c.l.b16 %v678
        %v718 = vunpack.c.l.b16 %v679
        %v719 = vunpack.c.l.b16 %v680
        %v720 = vunpack.c.l.b16 %v681
        %v721 = vunpack.c.l.b16 %v682
        %v722 = vunpack.c.l.b16 %v683
        %v723 = vunpack.c.l.b16 %v684
        %v724 = vunpack.c.l.b16 %v685
        %v725 = vunpack.c.l.b16 %v686
        %v726 = vunpack.c.l.b16 %v687
        %v727 = vunpack.c.l.b16 %v688
        %v728 = vunpack.c.l.b16 %v689
        %v729 = vunpack.c.l.b16 %v690
        %v730 = vpack.c.b16 %v715, %v714
        %v731 = vpack.c.b16 %v717, %v716
        %v732 = vpack.c.b16 %v719, %v718
        %v733 = vpack.c.b16 %v721, %v720
        %v734 = vpack.c.b16 %v723, %v722
        %v735 = vpack.c.b16 %v725, %v724
        %v736 = vpack.c.b16 %v727, %v726
        %v737 = vpack.c.b16 %v729, %v728
        %746 = vmatprep.subr.bf16.mxu0 0
        %747 = vmatpush1.bf16.msra.mxu0 %v737
        %748 = vmatprep.subr.bf16.mxu0 0
        %749 = vmatpush1.bf16.msra.mxu0 %v736
        %750 = vmatprep.subr.bf16.mxu0 0
        %751 = vmatpush1.bf16.msra.mxu0 %v735
        %752 = vmatprep.subr.bf16.mxu0 0
        %753 = vmatpush1.bf16.msra.mxu0 %v734
        %754 = vmatprep.subr.bf16.mxu0 0
        %755 = vmatpush1.bf16.msra.mxu0 %v733
        %756 = vmatprep.subr.bf16.mxu0 0
        %757 = vmatpush1.bf16.msra.mxu0 %v732
        %758 = vmatprep.subr.bf16.mxu0 0
        %759 = vmatpush1.bf16.msra.mxu0 %v731
        %760 = vmatprep.subr.bf16.mxu0 0
        %761 = vmatpush1.bf16.msra.mxu0 %v730
        %762 = vmatprep.subr.bf16.mxu0 0
        %763 = vmatpush2.bf16.msra.mxu0 0
        %764 = vmatprep.subr.bf16.mxu0 0
        %765 = vmatpush2.bf16.msra.mxu0 0
        %766 = vmatprep.subr.bf16.mxu0 0
        %767 = vmatpush2.bf16.msra.mxu0 0
        %768 = vmatprep.subr.bf16.mxu0 0
        %769 = vmatpush2.bf16.msra.mxu0 0
        %770 = vmatprep.subr.bf16.mxu0 0
        %771 = vmatpush2.bf16.msra.mxu0 0
        %772 = vmatprep.subr.bf16.mxu0 0
        %773 = vmatpush2.bf16.msra.mxu0 0
        %774 = vmatprep.subr.bf16.mxu0 0
        %775 = vmatpush2.bf16.msra.mxu0 0
        %776 = vmatprep.subr.bf16.mxu0 0
        %777 = vmatpush2.bf16.msra.mxu0 0
        %778 = vmatprep.mubr.bf16.mxu0 0
        %779 = vmatmul.mubr.bf16.gmra.mxu0 %v674
        %v780 = vpop.f32.mrf.mxu0
        %v781 = vadd.f32 %v696, %v780
        %v782 = vpop.f32.mrf.mxu0
        %v783 = vpop.f32.mrf.mxu0
        %v784 = vpop.f32.mrf.mxu0
        %785 = vdwg.mxu0
        %vm786 = vcmask 130048
        %787 = vst.msk [vmem:[%s376] sm:$0xff] %vm786, %v781
        %p788 = scmp.lt.s32.totalorder %s24, 3
        %s789 = scalar_select %p788, %s24, 3
        %s790 = smul.addr %s789, 8
        %s791 = scalar_lea.vmem %s9, %s790
        // Predicated region
        $region69: #{tpu_custom_call.1} parent=55 // pred_check
          %p792 = pneg %p236
        $region70: #{tpu_custom_call.1} parent=55 // pred_check_branch
          %794 = sbr.rel (%p792) target = $region72
        $region71: #{tpu_custom_call.1} parent=55 // pred_region
          _
        $region72: #{tpu_custom_call.1} parent=55 // pred_fallthru
          _
      $region56: #{tpu_custom_call.1} parent=5 // pred_fallthru
        _
      %p795 = scmp.le.s32.totalorder 2, %s19
      // Predicated region
      $region73: #{tpu_custom_call.1} parent=5 // pred_check
        %p796 = pneg %p795
      $region74: #{tpu_custom_call.1} parent=5 // pred_check_branch
        %798 = sbr.rel (%p796) target = $region76
      $region75: #{tpu_custom_call.1} parent=5 // pred_region
        %s799 = ssub.s32 %s19, 2
        // Predicated region
        $region77: #{tpu_custom_call.1} parent=75 // pred_check
          %p800 = pneg %p242
        $region78: #{tpu_custom_call.1} parent=75 // pred_check_branch
          %802 = sbr.rel (%p800) target = $region80
        $region79: #{tpu_custom_call.1} parent=75 // pred_region
          %p803 = scmp.lt.s32.totalorder %s25, 3
          %s804 = scalar_select %p803, %s25, 3
          %s805 = smul.addr %s804, 8
          %s806 = scalar_lea.vmem %s9, %s805
        $region80: #{tpu_custom_call.1} parent=75 // pred_fallthru
          _
      $region76: #{tpu_custom_call.1} parent=5 // pred_fallthru
        _
    $region6: #{tpu_custom_call.1} parent=1 // loop_footer
      %s23 = sadd.s32 1, %s19
    $region7: #{tpu_custom_call.1} parent=1 // loop_footer_branch
      %18 = sbr.rel target = $region3
    $region8: #{tpu_custom_call.1} parent=1 // loop_exit
      _
    %807 = vsyncpa [#allocation3], 1
    %s808 = scalar_lea.sflag [#allocation3], 1
    %809 = vsyncpa %s808, 1
    %810 = vsyncpa [#allocation5], 1

</llo_original>
